<compile_context>
chip_gen: v7x
topology: tpu7x:2x2x1
jax: 0.10.0
libtpu: 0.0.40
codegen_flags: <defaults>
</compile_context>

<pallas_src>
import numpy as np
import jax
import jax.numpy as jnp
from jax.experimental import pallas as pl
from jax.experimental.pallas import tpu as pltpu

# ---------------------------------------------------------------------------
# Model configuration (the "hyperparameters" object of the PyTorch module)
# ---------------------------------------------------------------------------
B = 2               # batch size
L = 350             # input sequence length
C1, K1 = 16, 3      # conv1: out_channels, kernel_size (in_channels = 1)
C2, K2 = 32, 3      # conv2: out_channels, kernel_size
P1 = P2 = 2         # pool kernel sizes
L1 = L - K1 + 1             # 348  (conv1 output length)
L1P = L1 // P1              # 174  (pool1 output length)
L2 = L1P - K2 + 1           # 172  (conv2 output length)
L2P = L2 // P2              # 86   (pool2 output length)
FLAT = C2 * L2P             # 2752 == nn.Linear(in_features=2752)
H = 64                      # fc1 out_features
OUT = 1                     # output layer out_features
assert FLAT == 2752

SLOT = 128                  # lanes per batch slot
LW = B * SLOT               # 256  (lane width of all working tiles)
NSTR = 2 * P1 * P2 + (K1 - 1)   # 10 phase streams x[b, 4t+r], r = 0..9
NROWS = NSTR + 1                # + downsampled-mask row
KC = K2 * C1 + 1                # 49 = conv2 contraction (3 taps x 16 ch) + bias row

# packed-parameter block row offsets (all multiples of 8 -> free static slices)
R_W2 = 0                    # rows  0: 32, lanes 0:49   conv2 weight (+b2 column)
R_WC = C2                   # rows 32: 64, lanes 0:256  folded fc1∘output weight
R_W1 = 2 * C2               # rows 64:112               conv1 taps, pre-broadcast
R_B1 = R_W1 + K1 * C1       # rows 112:128              conv1 bias, pre-broadcast
PACK_ROWS = R_B1 + C1       # 128

# nearest-neighbour downsample indices for F.interpolate(mode='nearest')
MIDX = np.arange(L2P) * L // L2P                              # (86,)
# phase-stream gather indices: IDX[r, t] = 4t + r
IDX = 4 * np.arange(L2P)[None, :] + np.arange(NSTR)[:, None]  # (10, 86)
assert int(IDX.max()) < L


# ---------------------------------------------------------------------------
# Fused Pallas kernel: whole forward pass for the whole (tiny) batch
# ---------------------------------------------------------------------------
def _cnn_fused_kernel(xin_ref, pack_ref, out_ref):
    """Shapes:
      xin_ref:  (11, 256)  rows 0..9: phase streams x[b,4t+r] in batch lane slots,
                           row 10: nearest-downsampled mask; pad lanes are zero.
      pack_ref: (128, 256) packed parameters (see row offsets above).
      out_ref:  (B, 1)
    """
    # ---- unpack the single packed parameter block (static, aligned slices) ----
    w2cb = pack_ref[R_W2:R_W2 + C2, 0:KC]              # (32, 49) conv2 w + b2 column
    bc   = pack_ref[0:1, SLOT:SLOT + 1]                # (1, 1)   folded bias
    wc2  = pack_ref[R_WC:R_WC + C2, :]                 # (32, 256) folded fc1∘output w
    w1b0 = pack_ref[R_W1 + 0 * C1:R_W1 + 1 * C1, :]    # (16, 256) conv1 tap 0
    w1b1 = pack_ref[R_W1 + 1 * C1:R_W1 + 2 * C1, :]    # (16, 256) conv1 tap 1
    w1b2 = pack_ref[R_W1 + 2 * C1:R_W1 + 3 * C1, :]    # (16, 256) conv1 tap 2
    b1b  = pack_ref[R_B1:R_B1 + C1, :]                 # (16, 256) conv1 bias

    # ---- input phase streams: one explicit sublane broadcast each (no re-emit) ----
    xs = [jnp.broadcast_to(xin_ref[r:r + 1, :], (C1, LW)) for r in range(NSTR)]
    mrow = xin_ref[NSTR:NSTR + 1, :]                   # (1, 256) downsampled mask

    # ---- conv1 + ReLU + MaxPool1d(2): VPU FMAs, both batches at once ----------
    def y1(a, b, c):                                   # conv1 output at one phase
        return w1b0 * a + w1b1 * b + w1b2 * c + b1b
    # p1e[t]=pool1 out at even idx 2t, p1o[t]=odd idx 2t+1; *s = shifted by one (t+1)
    p1e  = jnp.maximum(jnp.maximum(y1(xs[0], xs[1], xs[2]), y1(xs[1], xs[2], xs[3])), 0.0)
    p1o  = jnp.maximum(jnp.maximum(y1(xs[2], xs[3], xs[4]), y1(xs[3], xs[4], xs[5])), 0.0)
    p1es = jnp.maximum(jnp.maximum(y1(xs[4], xs[5], xs[6]), y1(xs[5], xs[6], xs[7])), 0.0)
    p1os = jnp.maximum(jnp.maximum(y1(xs[6], xs[7], xs[8]), y1(xs[7], xs[8], xs[9])), 0.0)

    # ---- conv2(+b2) for both parities and both batches: ONE MXU matmul --------
    ones = jnp.ones((1, LW), jnp.float32)              # bias row (b2 folded into w2cb)
    a_even = jnp.concatenate([p1e, p1o, p1es, ones], axis=0)    # (49, 256)
    a_odd  = jnp.concatenate([p1o, p1es, p1os, ones], axis=0)   # (49, 256)
    a_all  = jnp.concatenate([a_even, a_odd], axis=1)           # (49, 512)
    y_all = jnp.dot(w2cb, a_all, preferred_element_type=jnp.float32)  # (32, 512)

    # ---- ReLU + MaxPool1d(2) + mask + folded fc1∘output -----------------------
    p2 = jnp.maximum(jnp.maximum(y_all[:, 0:LW], y_all[:, LW:2 * LW]), 0.0)  # (32,256)
    weighted = p2 * mrow * wc2          # pad lanes of mrow/wc2 are zero -> no leakage
    colsum = jnp.sum(weighted, axis=0, keepdims=True)           # (1, 256)
    outs = [jnp.sum(colsum[:, b * SLOT:(b + 1) * SLOT], axis=1, keepdims=True)
            for b in range(B)]                                   # B x (1, 1)
    out_ref[...] = jnp.concatenate(outs, axis=0) + bc            # (B, 1)


def cnn_fused(xin, pack):
    return pl.pallas_call(
        _cnn_fused_kernel,
        out_shape=jax.ShapeDtypeStruct((B, OUT), jnp.float32),
        grid=(1,),
        in_specs=[
            pl.BlockSpec((NROWS, LW), lambda i: (0, 0)),
            pl.BlockSpec((PACK_ROWS, LW), lambda i: (0, 0)),
        ],
        out_specs=pl.BlockSpec((B, OUT), lambda i: (0, 0)),
        compiler_params=pltpu.CompilerParams(
            dimension_semantics=("arbitrary",)),
    )(xin, pack)


# ---------------------------------------------------------------------------
# Forward pass (only ~12 KB of layout glue on the raw inputs remains outside)
# ---------------------------------------------------------------------------
def cnn_forward(x, mask, params):
    # phase-stream gather (incl. the shift-by-one streams) + mask downsample
    xg = x[:, IDX]                                      # (B, 10, 86)
    mrow = mask[:, MIDX][:, None, :]                    # (B, 1, 86)
    rows = jnp.concatenate([xg, mrow], axis=1)          # (B, 11, 86)
    rows = jnp.pad(rows, ((0, 0), (0, 0), (0, SLOT - L2P)))       # (B, 11, 128)
    xin = jnp.transpose(rows, (1, 0, 2)).reshape(NROWS, LW)       # (11, 256)
    out = cnn_fused(xin, params["pack"])                # (B, 1)
    return jnp.squeeze(out)                             # x.squeeze()


# ---------------------------------------------------------------------------
# Deterministic parameter init (PyTorch layouts kept for the reference check)
# ---------------------------------------------------------------------------
def init_params(key):
    ks = jax.random.split(key, 8)
    w1 = 0.3 * jax.random.normal(ks[0], (C1, 1, K1), jnp.float32)   # (out,in,k)
    b1 = 0.1 * jax.random.normal(ks[1], (C1,), jnp.float32)
    w2 = 0.1 * jax.random.normal(ks[2], (C2, C1, K2), jnp.float32)
    b2 = 0.1 * jax.random.normal(ks[3], (C2,), jnp.float32)
    wfc = 0.05 * jax.random.normal(ks[4], (H, FLAT), jnp.float32)
    bfc = 0.1 * jax.random.normal(ks[5], (H,), jnp.float32)
    wo = 0.1 * jax.random.normal(ks[6], (OUT, H), jnp.float32)
    bo = 0.1 * jax.random.normal(ks[7], (OUT,), jnp.float32)

    # ---- build the single packed parameter block (host-side, done once) ----
    w1n, b1n, w2n, b2n = map(np.asarray, (w1, b1, w2, b2))
    wfcn, bfcn, won, bon = map(np.asarray, (wfc, bfc, wo, bo))

    # conv2 weight with taps concatenated on the contraction axis + b2 column
    w2c = np.transpose(w2n, (0, 2, 1)).reshape(C2, K2 * C1)       # (32, 48)
    w2cb = np.concatenate([w2c, b2n.reshape(C2, 1)], axis=1)      # (32, 49)
    # folded fc1∘output (valid: no activation between fc1 and the output layer)
    wc = (won @ wfcn).reshape(C2, L2P)                  # channel-major flatten order
    bc = float((won @ bfcn + bon)[0])
    wc_pad = np.zeros((C2, SLOT), np.float32)
    wc_pad[:, :L2P] = wc
    wc2 = np.tile(wc_pad, (1, B))                                 # (32, 256)

    pack = np.zeros((PACK_ROWS, LW), np.float32)
    pack[R_W2:R_W2 + C2, 0:KC] = w2cb
    pack[0, SLOT] = bc
    pack[R_WC:R_WC + C2, :] = wc2
    for k in range(K1):
        pack[R_W1 + k * C1:R_W1 + (k + 1) * C1, :] = w1n[:, 0, k][:, None]
    pack[R_B1:R_B1 + C1, :] = b1n[:, None]

    return dict(
        # PyTorch-layout originals (used by the pure-JAX reference)
        w1=w1, b1=b1, w2=w2, b2=b2, wfc=wfc, bfc=bfc, wo=wo, bo=bo,
        # kernel-facing packed parameter block (one DMA)
        pack=jnp.asarray(pack),
    )


# ---------------------------------------------------------------------------
# Pure-JAX reference (same math via XLA conv/reduce_window) for validation
# ---------------------------------------------------------------------------
def reference_forward(x, mask, params):
    xc = x[:, None, :]                                             # (B,1,L)
    y1 = jax.lax.conv_general_dilated(
        xc, params["w1"], window_strides=(1,), padding="VALID",
        dimension_numbers=("NCH", "OIH", "NCH")) + params["b1"][None, :, None]
    y1 = jnp.maximum(y1, 0.0)
    p1 = jax.lax.reduce_window(y1, -jnp.inf, jax.lax.max,
                               (1, 1, P1), (1, 1, P1), "VALID")
    y2 = jax.lax.conv_general_dilated(
        p1, params["w2"], window_strides=(1,), padding="VALID",
        dimension_numbers=("NCH", "OIH", "NCH")) + params["b2"][None, :, None]
    y2 = jnp.maximum(y2, 0.0)
    p2 = jax.lax.reduce_window(y2, -jnp.inf, jax.lax.max,
                               (1, 1, P2), (1, 1, P2), "VALID")
    p2 = p2 * mask[:, None, :][:, :, MIDX]
    flat = p2.reshape(B, FLAT)
    h = flat @ params["wfc"].T + params["bfc"]
    o = h @ params["wo"].T + params["bo"]
    return jnp.squeeze(o)


# ---------------------------------------------------------------------------
if __name__ == "__main__":
    key = jax.random.PRNGKey(0)
    kx, km, kp = jax.random.split(key, 3)
    x = jax.random.normal(kx, (B, L), jnp.float32)
    mask = (jax.random.uniform(km, (B, L)) > 0.25).astype(jnp.float32)
    params = init_params(kp)

    out = jax.jit(cnn_forward)(x, mask, params)
    out = jax.block_until_ready(out)

    ref = reference_forward(x, mask, params)
    np.testing.assert_allclose(np.asarray(out), np.asarray(ref),
                               rtol=1e-2, atol=1e-2)
    print("KERNEL_OK")
</pallas_src>

<mosaic_0001>
module attributes {stable_mosaic.version = 11 : i64} {
  func.func @_cnn_fused_kernel(%arg0: i32, %arg1: memref<11x256xf32, #tpu.memory_space<vmem>>, %arg2: memref<128x256xf32, #tpu.memory_space<vmem>>, %arg3: memref<2x1xf32, #tpu.memory_space<vmem>>) attributes {dimension_semantics = [#tpu.dimension_semantics<arbitrary>], iteration_bounds = array<i64: 1>, scalar_prefetch = 0 : i64, scratch_operands = 0 : i64, tpu.core_type = #tpu.core_type<tc>, window_params = [{pipeline_mode = #tpu.pipeline_mode<synchronous>, transform_indices = @transform_0, window_bounds = array<i64: 11, 256>}, {pipeline_mode = #tpu.pipeline_mode<synchronous>, transform_indices = @transform_1, window_bounds = array<i64: 128, 256>}, {pipeline_mode = #tpu.pipeline_mode<synchronous>, transform_indices = @transform_2, window_bounds = array<i64: 2, 1>}]} {
    %c0 = arith.constant 0 : index
    %c0_0 = arith.constant 0 : index
    %0 = vector.load %arg2[%c0, %c0_0] : memref<128x256xf32, #tpu.memory_space<vmem>>, vector<32x49xf32>
    %c0_1 = arith.constant 0 : index
    %c128 = arith.constant 128 : index
    %1 = vector.load %arg2[%c0_1, %c128] : memref<128x256xf32, #tpu.memory_space<vmem>>, vector<1x1xf32>
    %c32 = arith.constant 32 : index
    %c0_2 = arith.constant 0 : index
    %2 = vector.load %arg2[%c32, %c0_2] : memref<128x256xf32, #tpu.memory_space<vmem>>, vector<32x256xf32>
    %c64 = arith.constant 64 : index
    %c0_3 = arith.constant 0 : index
    %3 = vector.load %arg2[%c64, %c0_3] : memref<128x256xf32, #tpu.memory_space<vmem>>, vector<16x256xf32>
    %c80 = arith.constant 80 : index
    %c0_4 = arith.constant 0 : index
    %4 = vector.load %arg2[%c80, %c0_4] : memref<128x256xf32, #tpu.memory_space<vmem>>, vector<16x256xf32>
    %c96 = arith.constant 96 : index
    %c0_5 = arith.constant 0 : index
    %5 = vector.load %arg2[%c96, %c0_5] : memref<128x256xf32, #tpu.memory_space<vmem>>, vector<16x256xf32>
    %c112 = arith.constant 112 : index
    %c0_6 = arith.constant 0 : index
    %6 = vector.load %arg2[%c112, %c0_6] : memref<128x256xf32, #tpu.memory_space<vmem>>, vector<16x256xf32>
    %c0_7 = arith.constant 0 : index
    %c0_8 = arith.constant 0 : index
    %7 = vector.load %arg1[%c0_7, %c0_8] : memref<11x256xf32, #tpu.memory_space<vmem>>, vector<1x256xf32>
    %8 = vector.shape_cast %7 : vector<1x256xf32> to vector<1x256xf32>
    %9 = vector.broadcast %8 : vector<1x256xf32> to vector<16x256xf32>
    %c1 = arith.constant 1 : index
    %c0_9 = arith.constant 0 : index
    %10 = vector.load %arg1[%c1, %c0_9] : memref<11x256xf32, #tpu.memory_space<vmem>>, vector<1x256xf32>
    %11 = vector.shape_cast %10 : vector<1x256xf32> to vector<1x256xf32>
    %12 = vector.broadcast %11 : vector<1x256xf32> to vector<16x256xf32>
    %c2 = arith.constant 2 : index
    %c0_10 = arith.constant 0 : index
    %13 = vector.load %arg1[%c2, %c0_10] : memref<11x256xf32, #tpu.memory_space<vmem>>, vector<1x256xf32>
    %14 = vector.shape_cast %13 : vector<1x256xf32> to vector<1x256xf32>
    %15 = vector.broadcast %14 : vector<1x256xf32> to vector<16x256xf32>
    %c3 = arith.constant 3 : index
    %c0_11 = arith.constant 0 : index
    %16 = vector.load %arg1[%c3, %c0_11] : memref<11x256xf32, #tpu.memory_space<vmem>>, vector<1x256xf32>
    %17 = vector.shape_cast %16 : vector<1x256xf32> to vector<1x256xf32>
    %18 = vector.broadcast %17 : vector<1x256xf32> to vector<16x256xf32>
    %c4 = arith.constant 4 : index
    %c0_12 = arith.constant 0 : index
    %19 = vector.load %arg1[%c4, %c0_12] : memref<11x256xf32, #tpu.memory_space<vmem>>, vector<1x256xf32>
    %20 = vector.shape_cast %19 : vector<1x256xf32> to vector<1x256xf32>
    %21 = vector.broadcast %20 : vector<1x256xf32> to vector<16x256xf32>
    %c5 = arith.constant 5 : index
    %c0_13 = arith.constant 0 : index
    %22 = vector.load %arg1[%c5, %c0_13] : memref<11x256xf32, #tpu.memory_space<vmem>>, vector<1x256xf32>
    %23 = vector.shape_cast %22 : vector<1x256xf32> to vector<1x256xf32>
    %24 = vector.broadcast %23 : vector<1x256xf32> to vector<16x256xf32>
    %c6 = arith.constant 6 : index
    %c0_14 = arith.constant 0 : index
    %25 = vector.load %arg1[%c6, %c0_14] : memref<11x256xf32, #tpu.memory_space<vmem>>, vector<1x256xf32>
    %26 = vector.shape_cast %25 : vector<1x256xf32> to vector<1x256xf32>
    %27 = vector.broadcast %26 : vector<1x256xf32> to vector<16x256xf32>
    %c7 = arith.constant 7 : index
    %c0_15 = arith.constant 0 : index
    %28 = vector.load %arg1[%c7, %c0_15] : memref<11x256xf32, #tpu.memory_space<vmem>>, vector<1x256xf32>
    %29 = vector.shape_cast %28 : vector<1x256xf32> to vector<1x256xf32>
    %30 = vector.broadcast %29 : vector<1x256xf32> to vector<16x256xf32>
    %c8 = arith.constant 8 : index
    %c0_16 = arith.constant 0 : index
    %31 = vector.load %arg1[%c8, %c0_16] : memref<11x256xf32, #tpu.memory_space<vmem>>, vector<1x256xf32>
    %32 = vector.shape_cast %31 : vector<1x256xf32> to vector<1x256xf32>
    %33 = vector.broadcast %32 : vector<1x256xf32> to vector<16x256xf32>
    %c9 = arith.constant 9 : index
    %c0_17 = arith.constant 0 : index
    %34 = vector.load %arg1[%c9, %c0_17] : memref<11x256xf32, #tpu.memory_space<vmem>>, vector<1x256xf32>
    %35 = vector.shape_cast %34 : vector<1x256xf32> to vector<1x256xf32>
    %36 = vector.broadcast %35 : vector<1x256xf32> to vector<16x256xf32>
    %c10 = arith.constant 10 : index
    %c0_18 = arith.constant 0 : index
    %37 = vector.load %arg1[%c10, %c0_18] : memref<11x256xf32, #tpu.memory_space<vmem>>, vector<1x256xf32>
    %38 = arith.mulf %3, %9 : vector<16x256xf32>
    %39 = arith.mulf %4, %12 : vector<16x256xf32>
    %40 = arith.addf %38, %39 : vector<16x256xf32>
    %41 = arith.mulf %5, %15 : vector<16x256xf32>
    %42 = arith.addf %40, %41 : vector<16x256xf32>
    %43 = arith.addf %42, %6 : vector<16x256xf32>
    %44 = arith.mulf %3, %12 : vector<16x256xf32>
    %45 = arith.mulf %4, %15 : vector<16x256xf32>
    %46 = arith.addf %44, %45 : vector<16x256xf32>
    %47 = arith.mulf %5, %18 : vector<16x256xf32>
    %48 = arith.addf %46, %47 : vector<16x256xf32>
    %49 = arith.addf %48, %6 : vector<16x256xf32>
    %50 = arith.maximumf %43, %49 : vector<16x256xf32>
    %cst = arith.constant 0.000000e+00 : f32
    %51 = vector.broadcast %cst : f32 to vector<16x256xf32>
    %52 = arith.maximumf %50, %51 : vector<16x256xf32>
    %53 = arith.mulf %3, %15 : vector<16x256xf32>
    %54 = arith.mulf %4, %18 : vector<16x256xf32>
    %55 = arith.addf %53, %54 : vector<16x256xf32>
    %56 = arith.mulf %5, %21 : vector<16x256xf32>
    %57 = arith.addf %55, %56 : vector<16x256xf32>
    %58 = arith.addf %57, %6 : vector<16x256xf32>
    %59 = arith.mulf %3, %18 : vector<16x256xf32>
    %60 = arith.mulf %4, %21 : vector<16x256xf32>
    %61 = arith.addf %59, %60 : vector<16x256xf32>
    %62 = arith.mulf %5, %24 : vector<16x256xf32>
    %63 = arith.addf %61, %62 : vector<16x256xf32>
    %64 = arith.addf %63, %6 : vector<16x256xf32>
    %65 = arith.maximumf %58, %64 : vector<16x256xf32>
    %cst_19 = arith.constant 0.000000e+00 : f32
    %66 = vector.broadcast %cst_19 : f32 to vector<16x256xf32>
    %67 = arith.maximumf %65, %66 : vector<16x256xf32>
    %68 = arith.mulf %3, %21 : vector<16x256xf32>
    %69 = arith.mulf %4, %24 : vector<16x256xf32>
    %70 = arith.addf %68, %69 : vector<16x256xf32>
    %71 = arith.mulf %5, %27 : vector<16x256xf32>
    %72 = arith.addf %70, %71 : vector<16x256xf32>
    %73 = arith.addf %72, %6 : vector<16x256xf32>
    %74 = arith.mulf %3, %24 : vector<16x256xf32>
    %75 = arith.mulf %4, %27 : vector<16x256xf32>
    %76 = arith.addf %74, %75 : vector<16x256xf32>
    %77 = arith.mulf %5, %30 : vector<16x256xf32>
    %78 = arith.addf %76, %77 : vector<16x256xf32>
    %79 = arith.addf %78, %6 : vector<16x256xf32>
    %80 = arith.maximumf %73, %79 : vector<16x256xf32>
    %cst_20 = arith.constant 0.000000e+00 : f32
    %81 = vector.broadcast %cst_20 : f32 to vector<16x256xf32>
    %82 = arith.maximumf %80, %81 : vector<16x256xf32>
    %83 = arith.mulf %3, %27 : vector<16x256xf32>
    %84 = arith.mulf %4, %30 : vector<16x256xf32>
    %85 = arith.addf %83, %84 : vector<16x256xf32>
    %86 = arith.mulf %5, %33 : vector<16x256xf32>
    %87 = arith.addf %85, %86 : vector<16x256xf32>
    %88 = arith.addf %87, %6 : vector<16x256xf32>
    %89 = arith.mulf %3, %30 : vector<16x256xf32>
    %90 = arith.mulf %4, %33 : vector<16x256xf32>
    %91 = arith.addf %89, %90 : vector<16x256xf32>
    %92 = arith.mulf %5, %36 : vector<16x256xf32>
    %93 = arith.addf %91, %92 : vector<16x256xf32>
    %94 = arith.addf %93, %6 : vector<16x256xf32>
    %95 = arith.maximumf %88, %94 : vector<16x256xf32>
    %cst_21 = arith.constant 0.000000e+00 : f32
    %96 = vector.broadcast %cst_21 : f32 to vector<16x256xf32>
    %97 = arith.maximumf %95, %96 : vector<16x256xf32>
    %cst_22 = arith.constant 1.000000e+00 : f32
    %98 = vector.broadcast %cst_22 : f32 to vector<1x256xf32>
    %99 = tpu.concatenate %52, %67, %82, %98 in 0 : vector<16x256xf32>, vector<16x256xf32>, vector<16x256xf32>, vector<1x256xf32> -> vector<49x256xf32>
    %100 = tpu.concatenate %67, %82, %97, %98 in 0 : vector<16x256xf32>, vector<16x256xf32>, vector<16x256xf32>, vector<1x256xf32> -> vector<49x256xf32>
    %101 = tpu.concatenate %99, %100 in 1 : vector<49x256xf32>, vector<49x256xf32> -> vector<49x512xf32>
    %cst_23 = arith.constant dense<0.000000e+00> : vector<32x512xf32>
    %102 = tpu.matmul %0, %101, %cst_23 {dimension_numbers = #tpu.dot_dimension_numbers<[1], [0], [0], [1], [0, 0, 1, 1], [], []>} : vector<32x49xf32>, vector<49x512xf32>, vector<32x512xf32> -> vector<32x512xf32>
    %103 = vector.extract_strided_slice %102 {offsets = [0, 0], sizes = [32, 256], strides = [1, 1]} : vector<32x512xf32> to vector<32x256xf32>
    %104 = vector.extract_strided_slice %102 {offsets = [0, 256], sizes = [32, 256], strides = [1, 1]} : vector<32x512xf32> to vector<32x256xf32>
    %105 = arith.maximumf %103, %104 : vector<32x256xf32>
    %cst_24 = arith.constant 0.000000e+00 : f32
    %106 = vector.broadcast %cst_24 : f32 to vector<32x256xf32>
    %107 = arith.maximumf %105, %106 : vector<32x256xf32>
    %108 = vector.broadcast %37 : vector<1x256xf32> to vector<32x256xf32>
    %109 = arith.mulf %107, %108 : vector<32x256xf32>
    %110 = arith.mulf %109, %2 : vector<32x256xf32>
    %cst_25 = arith.constant dense<0.000000e+00> : vector<256xf32>
    %111 = vector.multi_reduction <add>, %110, %cst_25 [0] : vector<32x256xf32> to vector<256xf32>
    %112 = vector.shape_cast %111 : vector<256xf32> to vector<1x256xf32>
    %113 = vector.extract_strided_slice %112 {offsets = [0, 0], sizes = [1, 128], strides = [1, 1]} : vector<1x256xf32> to vector<1x128xf32>
    %cst_26 = arith.constant dense<0.000000e+00> : vector<1xf32>
    %114 = vector.multi_reduction <add>, %113, %cst_26 [1] : vector<1x128xf32> to vector<1xf32>
    %115 = vector.shape_cast %114 : vector<1xf32> to vector<1x1xf32>
    %116 = vector.extract_strided_slice %112 {offsets = [0, 128], sizes = [1, 128], strides = [1, 1]} : vector<1x256xf32> to vector<1x128xf32>
    %cst_27 = arith.constant dense<0.000000e+00> : vector<1xf32>
    %117 = vector.multi_reduction <add>, %116, %cst_27 [1] : vector<1x128xf32> to vector<1xf32>
    %118 = vector.shape_cast %117 : vector<1xf32> to vector<1x1xf32>
    %119 = tpu.concatenate %115, %118 in 0 : vector<1x1xf32>, vector<1x1xf32> -> vector<2x1xf32>
    %120 = vector.broadcast %1 : vector<1x1xf32> to vector<2x1xf32>
    %121 = arith.addf %119, %120 : vector<2x1xf32>
    %c0_28 = arith.constant 0 : index
    %c0_29 = arith.constant 0 : index
    %122 = vector.load %arg3[%c0_28, %c0_29] : memref<2x1xf32, #tpu.memory_space<vmem>>, vector<2x1xf32>
    tpu.vector_store %arg3[%c0_28, %c0_29], %121 {strides = array<i32>} : memref<2x1xf32, #tpu.memory_space<vmem>>, vector<2x1xf32>,
    return
  }
  func.func @transform_0(%arg0: i32) -> (i32, i32) {
    %c0_i32 = arith.constant 0 : i32
    %c0_i32_0 = arith.constant 0 : i32
    %c0_i32_1 = arith.constant 0 : i32
    return %c0_i32, %c0_i32_0 : i32, i32
  }
  func.func @transform_1(%arg0: i32) -> (i32, i32) {
    %c0_i32 = arith.constant 0 : i32
    %c0_i32_0 = arith.constant 0 : i32
    %c0_i32_1 = arith.constant 0 : i32
    return %c0_i32, %c0_i32_0 : i32, i32
  }
  func.func @transform_2(%arg0: i32) -> (i32, i32) {
    %c0_i32 = arith.constant 0 : i32
    %c0_i32_0 = arith.constant 0 : i32
    %c0_i32_1 = arith.constant 0 : i32
    return %c0_i32, %c0_i32_0 : i32, i32
  }
}

</mosaic_0001>

<llo_original>
// kernel: cnn_forward.1
$region0: #{cnn_forward.1}
  #allocation0 [shape = 'u32[]', space=smem, size = 0x4, offset = 0x4, fixed_abs, tag = 'smem constant byte address 0x4 - core index']
  #allocation1 [shape = 'u32[144,128]{1,0:T(1,128)}', space=vmem, size = 0x12000, scoped, tag = 'internal scratch']
  %s0 = inlined_call_operand.vmem [shape: f32[11,256], index: 0, kind: input, shape index: {}]
  %s1 = inlined_call_operand.vmem [shape: f32[128,256], index: 1, kind: input, shape index: {}]
  %s2 = inlined_call_operand.vmem [shape: f32[2,1], index: 2, kind: output, shape index: {}]
  %s3 = sld [smem:[#allocation0]]
  $region18: #{cnn_forward.1} parent=0
    _
  %s5 = ssub.s32 1, %s3
  %s6 = scalar_select 0, %s5, %s3
  // Predicated region
  $region2: #{cnn_forward.1} parent=0 // pred_check
    _
  $region3: #{cnn_forward.1} parent=0 // pred_check_branch
    %8 = sbr.rel (0) target = $region5
  $region4: #{cnn_forward.1} parent=0 // pred_region
    _
  $region5: #{cnn_forward.1} parent=0 // pred_fallthru
    _
  // Predicated region
  $region6: #{cnn_forward.1} parent=0 // pred_check
    _
  $region7: #{cnn_forward.1} parent=0 // pred_check_branch
    %10 = sbr.rel (0) target = $region9
  $region8: #{cnn_forward.1} parent=0 // pred_region
    _
  $region9: #{cnn_forward.1} parent=0 // pred_fallthru
    _
  %v11 = vld [vmem:[%s1] sm:$0xff]
  %v12 = vld [vmem:[%s1 + $0x10] sm:$0xff]
  %v13 = vld [vmem:[%s1 + $0x20] sm:$0xff]
  %v14 = vld [vmem:[%s1 + $0x30] sm:$0xff]
  %v15 = vld [vmem:[%s1 + $0x8] ss:$0 sm:$0xff]
  %v16 = vld [vmem:[%s1 + $0x40] sm:$0xff]
  %v17 = vld [vmem:[%s1 + $0x48] sm:$0xff]
  %v18 = vld [vmem:[%s1 + $0x50] sm:$0xff]
  %v19 = vld [vmem:[%s1 + $0x58] sm:$0xff]
  %v20 = vld [vmem:[%s1 + $0x60] sm:$0xff]
  %v21 = vld [vmem:[%s1 + $0x68] sm:$0xff]
  %v22 = vld [vmem:[%s1 + $0x70] sm:$0xff]
  %v23 = vld [vmem:[%s1 + $0x78] sm:$0xff]
  %v24 = vld [vmem:[%s1 + $0x80] sm:$0xff]
  %v25 = vld [vmem:[%s1 + $0x88] sm:$0xff]
  %v26 = vld [vmem:[%s1 + $0x90] sm:$0xff]
  %v27 = vld [vmem:[%s1 + $0x98] sm:$0xff]
  %v28 = vld [vmem:[%s1 + $0xa0] sm:$0xff]
  %v29 = vld [vmem:[%s1 + $0xa8] sm:$0xff]
  %v30 = vld [vmem:[%s1 + $0xb0] sm:$0xff]
  %v31 = vld [vmem:[%s1 + $0xb8] sm:$0xff]
  %v32 = vld [vmem:[%s1 + $0xc0] sm:$0xff]
  %v33 = vld [vmem:[%s1 + $0xc8] sm:$0xff]
  %v34 = vld [vmem:[%s1 + $0xd0] sm:$0xff]
  %v35 = vld [vmem:[%s1 + $0xd8] sm:$0xff]
  %v36 = vld [vmem:[%s1 + $0xe0] sm:$0xff]
  %v37 = vld [vmem:[%s1 + $0xe8] sm:$0xff]
  %v38 = vld [vmem:[%s1 + $0xf0] sm:$0xff]
  %v39 = vld [vmem:[%s1 + $0xf8] sm:$0xff]
  %v40 = vld [vmem:[%s0] ss:$8 sm:$0x3]
  %v42 = vlaneseq
  %v43 = vshrl.u32 %v42, 7
  %v44 = vsub.s32 0, %v43
  %v45 = vrot.slane %v40, %v44
  %v46 = vlaneseq
  %v47 = vshrl.u32 %v46, 7
  %v48 = vsub.s32 1, %v47
  %v49 = vrot.slane %v40, %v48
  %s52 = scalar_lea.vmem %s0, 1
  %v53 = vld [vmem:[%s52] ss:$8 sm:$0x3]
  %v55 = vlaneseq
  %v56 = vshrl.u32 %v55, 7
  %v57 = vsub.s32 0, %v56
  %v58 = vrot.slane %v53, %v57
  %v59 = vlaneseq
  %v60 = vshrl.u32 %v59, 7
  %v61 = vsub.s32 1, %v60
  %v62 = vrot.slane %v53, %v61
  %s65 = scalar_lea.vmem %s0, 2
  %v66 = vld [vmem:[%s65] ss:$8 sm:$0x3]
  %v68 = vlaneseq
  %v69 = vshrl.u32 %v68, 7
  %v70 = vsub.s32 0, %v69
  %v71 = vrot.slane %v66, %v70
  %v72 = vlaneseq
  %v73 = vshrl.u32 %v72, 7
  %v74 = vsub.s32 1, %v73
  %v75 = vrot.slane %v66, %v74
  %s78 = scalar_lea.vmem %s0, 3
  %v79 = vld [vmem:[%s78] ss:$8 sm:$0x3]
  %v81 = vlaneseq
  %v82 = vshrl.u32 %v81, 7
  %v83 = vsub.s32 0, %v82
  %v84 = vrot.slane %v79, %v83
  %v85 = vlaneseq
  %v86 = vshrl.u32 %v85, 7
  %v87 = vsub.s32 1, %v86
  %v88 = vrot.slane %v79, %v87
  %s91 = scalar_lea.vmem %s0, 4
  %v92 = vld [vmem:[%s91] ss:$8 sm:$0x3]
  %v94 = vlaneseq
  %v95 = vshrl.u32 %v94, 7
  %v96 = vsub.s32 0, %v95
  %v97 = vrot.slane %v92, %v96
  %v98 = vlaneseq
  %v99 = vshrl.u32 %v98, 7
  %v100 = vsub.s32 1, %v99
  %v101 = vrot.slane %v92, %v100
  %s104 = scalar_lea.vmem %s0, 5
  %v105 = vld [vmem:[%s104] ss:$8 sm:$0x3]
  %v107 = vlaneseq
  %v108 = vshrl.u32 %v107, 7
  %v109 = vsub.s32 0, %v108
  %v110 = vrot.slane %v105, %v109
  %v111 = vlaneseq
  %v112 = vshrl.u32 %v111, 7
  %v113 = vsub.s32 1, %v112
  %v114 = vrot.slane %v105, %v113
  %s117 = scalar_lea.vmem %s0, 6
  %v118 = vld [vmem:[%s117] ss:$8 sm:$0x3]
  %v120 = vlaneseq
  %v121 = vshrl.u32 %v120, 7
  %v122 = vsub.s32 0, %v121
  %v123 = vrot.slane %v118, %v122
  %v124 = vlaneseq
  %v125 = vshrl.u32 %v124, 7
  %v126 = vsub.s32 1, %v125
  %v127 = vrot.slane %v118, %v126
  %s130 = scalar_lea.vmem %s0, 7
  %v131 = vld [vmem:[%s130] ss:$8 sm:$0x3]
  %v133 = vlaneseq
  %v134 = vshrl.u32 %v133, 7
  %v135 = vsub.s32 0, %v134
  %v136 = vrot.slane %v131, %v135
  %v137 = vlaneseq
  %v138 = vshrl.u32 %v137, 7
  %v139 = vsub.s32 1, %v138
  %v140 = vrot.slane %v131, %v139
  %s143 = scalar_lea.vmem %s0, 16
  %v144 = vld [vmem:[%s143] ss:$8 sm:$0x3]
  %v146 = vlaneseq
  %v147 = vshrl.u32 %v146, 7
  %v148 = vsub.s32 0, %v147
  %v149 = vrot.slane %v144, %v148
  %v150 = vlaneseq
  %v151 = vshrl.u32 %v150, 7
  %v152 = vsub.s32 1, %v151
  %v153 = vrot.slane %v144, %v152
  %s156 = scalar_lea.vmem %s0, 17
  %v157 = vld [vmem:[%s156] ss:$8 sm:$0x3]
  %v159 = vlaneseq
  %v160 = vshrl.u32 %v159, 7
  %v161 = vsub.s32 0, %v160
  %v162 = vrot.slane %v157, %v161
  %v163 = vlaneseq
  %v164 = vshrl.u32 %v163, 7
  %v165 = vsub.s32 1, %v164
  %v166 = vrot.slane %v157, %v165
  %s169 = scalar_lea.vmem %s0, 18
  %v170 = vld [vmem:[%s169] ss:$8 sm:$0x3]
  %v171 = vmul.f32 %v24, %v45
  %v172 = vmul.f32 %v25, %v49
  %v173 = vmul.f32 %v26, %v45
  %v174 = vmul.f32 %v27, %v49
  %v175 = vmul.f32 %v28, %v58
  %v176 = vmul.f32 %v29, %v62
  %v177 = vmul.f32 %v30, %v58
  %v178 = vmul.f32 %v31, %v62
  %v179 = vadd.f32 %v171, %v175
  %v180 = vadd.f32 %v172, %v176
  %v181 = vadd.f32 %v173, %v177
  %v182 = vadd.f32 %v174, %v178
  %v183 = vmul.f32 %v32, %v71
  %v184 = vmul.f32 %v33, %v75
  %v185 = vmul.f32 %v34, %v71
  %v186 = vmul.f32 %v35, %v75
  %v187 = vadd.f32 %v179, %v183
  %v188 = vadd.f32 %v180, %v184
  %v189 = vadd.f32 %v181, %v185
  %v190 = vadd.f32 %v182, %v186
  %v191 = vadd.f32 %v187, %v36
  %v192 = vadd.f32 %v188, %v37
  %v193 = vadd.f32 %v189, %v38
  %v194 = vadd.f32 %v190, %v39
  %v195 = vmul.f32 %v24, %v58
  %v196 = vmul.f32 %v25, %v62
  %v197 = vmul.f32 %v26, %v58
  %v198 = vmul.f32 %v27, %v62
  %v199 = vmul.f32 %v28, %v71
  %v200 = vmul.f32 %v29, %v75
  %v201 = vmul.f32 %v30, %v71
  %v202 = vmul.f32 %v31, %v75
  %v203 = vadd.f32 %v195, %v199
  %v204 = vadd.f32 %v196, %v200
  %v205 = vadd.f32 %v197, %v201
  %v206 = vadd.f32 %v198, %v202
  %v207 = vmul.f32 %v32, %v84
  %v208 = vmul.f32 %v33, %v88
  %v209 = vmul.f32 %v34, %v84
  %v210 = vmul.f32 %v35, %v88
  %v211 = vadd.f32 %v203, %v207
  %v212 = vadd.f32 %v204, %v208
  %v213 = vadd.f32 %v205, %v209
  %v214 = vadd.f32 %v206, %v210
  %v215 = vadd.f32 %v211, %v36
  %v216 = vadd.f32 %v212, %v37
  %v217 = vadd.f32 %v213, %v38
  %v218 = vadd.f32 %v214, %v39
  %v219 = vmax.f32 %v191, %v215
  %v220 = vmax.f32 %v192, %v216
  %v221 = vmax.f32 %v193, %v217
  %v222 = vmax.f32 %v194, %v218
  %v223 = vmax.f32 %v219, 0.0
  %v224 = vmax.f32 %v220, 0.0
  %v225 = vmax.f32 %v221, 0.0
  %v226 = vmax.f32 %v222, 0.0
  %v227 = vmul.f32 %v24, %v71
  %v228 = vmul.f32 %v25, %v75
  %v229 = vmul.f32 %v26, %v71
  %v230 = vmul.f32 %v27, %v75
  %v231 = vmul.f32 %v28, %v84
  %v232 = vmul.f32 %v29, %v88
  %v233 = vmul.f32 %v30, %v84
  %v234 = vmul.f32 %v31, %v88
  %v235 = vadd.f32 %v227, %v231
  %v236 = vadd.f32 %v228, %v232
  %v237 = vadd.f32 %v229, %v233
  %v238 = vadd.f32 %v230, %v234
  %v239 = vmul.f32 %v32, %v97
  %v240 = vmul.f32 %v33, %v101
  %v241 = vmul.f32 %v34, %v97
  %v242 = vmul.f32 %v35, %v101
  %v243 = vadd.f32 %v235, %v239
  %v244 = vadd.f32 %v236, %v240
  %v245 = vadd.f32 %v237, %v241
  %v246 = vadd.f32 %v238, %v242
  %v247 = vadd.f32 %v243, %v36
  %v248 = vadd.f32 %v244, %v37
  %v249 = vadd.f32 %v245, %v38
  %v250 = vadd.f32 %v246, %v39
  %v251 = vmul.f32 %v24, %v84
  %v252 = vmul.f32 %v25, %v88
  %v253 = vmul.f32 %v26, %v84
  %v254 = vmul.f32 %v27, %v88
  %v255 = vmul.f32 %v28, %v97
  %v256 = vmul.f32 %v29, %v101
  %v257 = vmul.f32 %v30, %v97
  %v258 = vmul.f32 %v31, %v101
  %v259 = vadd.f32 %v251, %v255
  %v260 = vadd.f32 %v252, %v256
  %v261 = vadd.f32 %v253, %v257
  %v262 = vadd.f32 %v254, %v258
  %v263 = vmul.f32 %v32, %v110
  %v264 = vmul.f32 %v33, %v114
  %v265 = vmul.f32 %v34, %v110
  %v266 = vmul.f32 %v35, %v114
  %v267 = vadd.f32 %v259, %v263
  %v268 = vadd.f32 %v260, %v264
  %v269 = vadd.f32 %v261, %v265
  %v270 = vadd.f32 %v262, %v266
  %v271 = vadd.f32 %v267, %v36
  %v272 = vadd.f32 %v268, %v37
  %v273 = vadd.f32 %v269, %v38
  %v274 = vadd.f32 %v270, %v39
  %v275 = vmax.f32 %v247, %v271
  %v276 = vmax.f32 %v248, %v272
  %v277 = vmax.f32 %v249, %v273
  %v278 = vmax.f32 %v250, %v274
  %v279 = vmax.f32 %v275, 0.0
  %v280 = vmax.f32 %v276, 0.0
  %v281 = vmax.f32 %v277, 0.0
  %v282 = vmax.f32 %v278, 0.0
  %v283 = vmul.f32 %v24, %v97
  %v284 = vmul.f32 %v25, %v101
  %v285 = vmul.f32 %v26, %v97
  %v286 = vmul.f32 %v27, %v101
  %v287 = vmul.f32 %v28, %v110
  %v288 = vmul.f32 %v29, %v114
  %v289 = vmul.f32 %v30, %v110
  %v290 = vmul.f32 %v31, %v114
  %v291 = vadd.f32 %v283, %v287
  %v292 = vadd.f32 %v284, %v288
  %v293 = vadd.f32 %v285, %v289
  %v294 = vadd.f32 %v286, %v290
  %v295 = vmul.f32 %v32, %v123
  %v296 = vmul.f32 %v33, %v127
  %v297 = vmul.f32 %v34, %v123
  %v298 = vmul.f32 %v35, %v127
  %v299 = vadd.f32 %v291, %v295
  %v300 = vadd.f32 %v292, %v296
  %v301 = vadd.f32 %v293, %v297
  %v302 = vadd.f32 %v294, %v298
  %v303 = vadd.f32 %v299, %v36
  %v304 = vadd.f32 %v300, %v37
  %v305 = vadd.f32 %v301, %v38
  %v306 = vadd.f32 %v302, %v39
  %v307 = vmul.f32 %v24, %v110
  %v308 = vmul.f32 %v25, %v114
  %v309 = vmul.f32 %v26, %v110
  %v310 = vmul.f32 %v27, %v114
  %v311 = vmul.f32 %v28, %v123
  %v312 = vmul.f32 %v29, %v127
  %v313 = vmul.f32 %v30, %v123
  %v314 = vmul.f32 %v31, %v127
  %v315 = vadd.f32 %v307, %v311
  %v316 = vadd.f32 %v308, %v312
  %v317 = vadd.f32 %v309, %v313
  %v318 = vadd.f32 %v310, %v314
  %v319 = vmul.f32 %v32, %v136
  %v320 = vmul.f32 %v33, %v140
  %v321 = vmul.f32 %v34, %v136
  %v322 = vmul.f32 %v35, %v140
  %v323 = vadd.f32 %v315, %v319
  %v324 = vadd.f32 %v316, %v320
  %v325 = vadd.f32 %v317, %v321
  %v326 = vadd.f32 %v318, %v322
  %v327 = vadd.f32 %v323, %v36
  %v328 = vadd.f32 %v324, %v37
  %v329 = vadd.f32 %v325, %v38
  %v330 = vadd.f32 %v326, %v39
  %v331 = vmax.f32 %v303, %v327
  %v332 = vmax.f32 %v304, %v328
  %v333 = vmax.f32 %v305, %v329
  %v334 = vmax.f32 %v306, %v330
  %v335 = vmax.f32 %v331, 0.0
  %v336 = vmax.f32 %v332, 0.0
  %v337 = vmax.f32 %v333, 0.0
  %v338 = vmax.f32 %v334, 0.0
  %v339 = vmul.f32 %v24, %v123
  %v340 = vmul.f32 %v25, %v127
  %v341 = vmul.f32 %v26, %v123
  %v342 = vmul.f32 %v27, %v127
  %v343 = vmul.f32 %v28, %v136
  %v344 = vmul.f32 %v29, %v140
  %v345 = vmul.f32 %v30, %v136
  %v346 = vmul.f32 %v31, %v140
  %v347 = vadd.f32 %v339, %v343
  %v348 = vadd.f32 %v340, %v344
  %v349 = vadd.f32 %v341, %v345
  %v350 = vadd.f32 %v342, %v346
  %v351 = vmul.f32 %v32, %v149
  %v352 = vmul.f32 %v33, %v153
  %v353 = vmul.f32 %v34, %v149
  %v354 = vmul.f32 %v35, %v153
  %v355 = vadd.f32 %v347, %v351
  %v356 = vadd.f32 %v348, %v352
  %v357 = vadd.f32 %v349, %v353
  %v358 = vadd.f32 %v350, %v354
  %v359 = vadd.f32 %v355, %v36
  %v360 = vadd.f32 %v356, %v37
  %v361 = vadd.f32 %v357, %v38
  %v362 = vadd.f32 %v358, %v39
  %v363 = vmul.f32 %v24, %v136
  %v364 = vmul.f32 %v25, %v140
  %v365 = vmul.f32 %v26, %v136
  %v366 = vmul.f32 %v27, %v140
  %v367 = vmul.f32 %v28, %v149
  %v368 = vmul.f32 %v29, %v153
  %v369 = vmul.f32 %v30, %v149
  %v370 = vmul.f32 %v31, %v153
  %v371 = vadd.f32 %v363, %v367
  %v372 = vadd.f32 %v364, %v368
  %v373 = vadd.f32 %v365, %v369
  %v374 = vadd.f32 %v366, %v370
  %v375 = vmul.f32 %v32, %v162
  %v376 = vmul.f32 %v33, %v166
  %v377 = vmul.f32 %v34, %v162
  %v378 = vmul.f32 %v35, %v166
  %v379 = vadd.f32 %v371, %v375
  %v380 = vadd.f32 %v372, %v376
  %v381 = vadd.f32 %v373, %v377
  %v382 = vadd.f32 %v374, %v378
  %v383 = vadd.f32 %v379, %v36
  %v384 = vadd.f32 %v380, %v37
  %v385 = vadd.f32 %v381, %v38
  %v386 = vadd.f32 %v382, %v39
  %v387 = vmax.f32 %v359, %v383
  %v388 = vmax.f32 %v360, %v384
  %v389 = vmax.f32 %v361, %v385
  %v390 = vmax.f32 %v362, %v386
  %v391 = vmax.f32 %v387, 0.0
  %v392 = vmax.f32 %v388, 0.0
  %v393 = vmax.f32 %v389, 0.0
  %v394 = vmax.f32 %v390, 0.0
  %vm395 = vcmask 400384
  %v397 = vsel %vm395, %v11, 0
  %v400 = vsel %vm395, %v12, 0
  %v403 = vsel %vm395, %v13, 0
  %v406 = vsel %vm395, %v14, 0
  %vm408 = vcmask 1040384
  %v410 = vsel %vm408, 1.0, 0
  %412 = vmatprep.subr.mxu0 %v224
  %413 = vmatpush1.msra.mxu0 %v223
  %414 = vmatprep.subr.mxu0 %v226
  %415 = vmatpush1.msra.mxu0 %v225
  %416 = vmatprep.subr.mxu0 %v280
  %417 = vmatpush1.msra.mxu0 %v279
  %418 = vmatprep.subr.mxu0 %v282
  %419 = vmatpush1.msra.mxu0 %v281
  %420 = vmatprep.subr.mxu0 %v336
  %421 = vmatpush1.msra.mxu0 %v335
  %422 = vmatprep.subr.mxu0 %v338
  %423 = vmatpush1.msra.mxu0 %v337
  %424 = vmatprep.subr.mxu0 %v410
  %425 = vmatpush1.msra.mxu0 %v410
  %426 = vmatprep.subr.mxu0 0.0
  %427 = vmatpush1.msra.mxu0 0.0
  %428 = vmatprep.subr.mxu0 0.0
  %429 = vmatpush1.msra.mxu0 0.0
  %430 = vmatprep.subr.mxu0 0.0
  %431 = vmatpush1.msra.mxu0 0.0
  %432 = vmatprep.subr.mxu0 0.0
  %433 = vmatpush1.msra.mxu0 0.0
  %434 = vmatprep.subr.mxu0 0.0
  %435 = vmatpush1.msra.mxu0 0.0
  %436 = vmatprep.subr.mxu0 0.0
  %437 = vmatpush1.msra.mxu0 0.0
  %438 = vmatprep.subr.mxu0 0.0
  %439 = vmatpush1.msra.mxu0 0.0
  %440 = vmatprep.subr.mxu0 0.0
  %441 = vmatpush1.msra.mxu0 0.0
  %442 = vmatprep.subr.mxu0 0.0
  %443 = vmatpush1.msra.mxu0 0.0
  %444 = vmatprep.subr.mxu0 0.0
  %445 = vmatpush1.msra.mxu0 0.0
  %446 = vmatprep.subr.mxu0 0.0
  %447 = vmatpush1.msra.mxu0 0.0
  %448 = vmatprep.subr.mxu0 0.0
  %449 = vmatpush1.msra.mxu0 0.0
  %450 = vmatprep.subr.mxu0 0.0
  %451 = vmatpush1.msra.mxu0 0.0
  %452 = vmatprep.subr.mxu0 0.0
  %453 = vmatpush1.msra.mxu0 0.0
  %454 = vmatprep.subr.mxu0 0.0
  %455 = vmatpush1.msra.mxu0 0.0
  %456 = vmatprep.subr.mxu0 0.0
  %457 = vmatpush1.msra.mxu0 0.0
  %458 = vmatprep.subr.mxu0 0.0
  %459 = vmatpush1.msra.mxu0 0.0
  %460 = vmatprep.subr.mxu0 0.0
  %461 = vmatpush1.msra.mxu0 0.0
  %462 = vmatprep.subr.mxu0 0.0
  %463 = vmatpush1.msra.mxu0 0.0
  %464 = vmatprep.subr.mxu0 0.0
  %465 = vmatpush1.msra.mxu0 0.0
  %466 = vmatprep.subr.mxu0 0.0
  %467 = vmatpush1.msra.mxu0 0.0
  %468 = vmatprep.subr.mxu0 0.0
  %469 = vmatpush1.msra.mxu0 0.0
  %470 = vmatprep.subr.mxu0 0.0
  %471 = vmatpush1.msra.mxu0 0.0
  %472 = vmatprep.subr.mxu0 0.0
  %473 = vmatpush1.msra.mxu0 0.0
  %474 = vmatprep.subr.mxu0 0.0
  %475 = vmatpush1.msra.mxu0 0.0
  %476 = vmatprep.mubr.f32.mxu0 0.0
  %477 = vmatmul.mubr.f32.gmra.mrb[0].mxu0 %v397
  %v478 = vpop.f32.mrb[0].mxu0
  %v479 = vadd.f32 0.0, %v478
  %v480 = vpop.f32.mrb[0].mxu0
  %v481 = vadd.f32 0.0, %v480
  %482 = vmatprep.mubr.f32.mxu0 0.0
  %483 = vmatmul.mubr.f32.gmra.mrb[0].mxu0 %v400
  %v484 = vpop.f32.mrb[0].mxu0
  %v485 = vadd.f32 0.0, %v484
  %v486 = vpop.f32.mrb[0].mxu0
  %v487 = vadd.f32 0.0, %v486
  %488 = vmatprep.mubr.f32.mxu0 0.0
  %489 = vmatmul.mubr.f32.gmra.mrb[0].mxu0 %v403
  %v490 = vpop.f32.mrb[0].mxu0
  %v491 = vadd.f32 0.0, %v490
  %v492 = vpop.f32.mrb[0].mxu0
  %v493 = vadd.f32 0.0, %v492
  %494 = vmatprep.mubr.f32.mxu0 0.0
  %495 = vmatmul.mubr.f32.gmra.mrb[0].mxu0 %v406
  %v496 = vpop.f32.mrb[0].mxu0
  %v497 = vadd.f32 0.0, %v496
  %v498 = vpop.f32.mrb[0].mxu0
  %v499 = vadd.f32 0.0, %v498
  %500 = vdwg.mxu0
  %501 = vmatprep.subr.mxu0 %v280
  %502 = vmatpush1.msra.mxu0 %v279
  %503 = vmatprep.subr.mxu0 %v282
  %504 = vmatpush1.msra.mxu0 %v281
  %505 = vmatprep.subr.mxu0 %v336
  %506 = vmatpush1.msra.mxu0 %v335
  %507 = vmatprep.subr.mxu0 %v338
  %508 = vmatpush1.msra.mxu0 %v337
  %509 = vmatprep.subr.mxu0 %v392
  %510 = vmatpush1.msra.mxu0 %v391
  %511 = vmatprep.subr.mxu0 %v394
  %512 = vmatpush1.msra.mxu0 %v393
  %513 = vmatprep.subr.mxu0 %v410
  %514 = vmatpush1.msra.mxu0 %v410
  %515 = vmatprep.subr.mxu0 0.0
  %516 = vmatpush1.msra.mxu0 0.0
  %517 = vmatprep.subr.mxu0 0.0
  %518 = vmatpush1.msra.mxu0 0.0
  %519 = vmatprep.subr.mxu0 0.0
  %520 = vmatpush1.msra.mxu0 0.0
  %521 = vmatprep.subr.mxu0 0.0
  %522 = vmatpush1.msra.mxu0 0.0
  %523 = vmatprep.subr.mxu0 0.0
  %524 = vmatpush1.msra.mxu0 0.0
  %525 = vmatprep.subr.mxu0 0.0
  %526 = vmatpush1.msra.mxu0 0.0
  %527 = vmatprep.subr.mxu0 0.0
  %528 = vmatpush1.msra.mxu0 0.0
  %529 = vmatprep.subr.mxu0 0.0
  %530 = vmatpush1.msra.mxu0 0.0
  %531 = vmatprep.subr.mxu0 0.0
  %532 = vmatpush1.msra.mxu0 0.0
  %533 = vmatprep.subr.mxu0 0.0
  %534 = vmatpush1.msra.mxu0 0.0
  %535 = vmatprep.subr.mxu0 0.0
  %536 = vmatpush1.msra.mxu0 0.0
  %537 = vmatprep.subr.mxu0 0.0
  %538 = vmatpush1.msra.mxu0 0.0
  %539 = vmatprep.subr.mxu0 0.0
  %540 = vmatpush1.msra.mxu0 0.0
  %541 = vmatprep.subr.mxu0 0.0
  %542 = vmatpush1.msra.mxu0 0.0
  %543 = vmatprep.subr.mxu0 0.0
  %544 = vmatpush1.msra.mxu0 0.0
  %545 = vmatprep.subr.mxu0 0.0
  %546 = vmatpush1.msra.mxu0 0.0
  %547 = vmatprep.subr.mxu0 0.0
  %548 = vmatpush1.msra.mxu0 0.0
  %549 = vmatprep.subr.mxu0 0.0
  %550 = vmatpush1.msra.mxu0 0.0
  %551 = vmatprep.subr.mxu0 0.0
  %552 = vmatpush1.msra.mxu0 0.0
  %553 = vmatprep.subr.mxu0 0.0
  %554 = vmatpush1.msra.mxu0 0.0
  %555 = vmatprep.subr.mxu0 0.0
  %556 = vmatpush1.msra.mxu0 0.0
  %557 = vmatprep.subr.mxu0 0.0
  %558 = vmatpush1.msra.mxu0 0.0
  %559 = vmatprep.subr.mxu0 0.0
  %560 = vmatpush1.msra.mxu0 0.0
  %561 = vmatprep.subr.mxu0 0.0
  %562 = vmatpush1.msra.mxu0 0.0
  %563 = vmatprep.subr.mxu0 0.0
  %564 = vmatpush1.msra.mxu0 0.0
  %565 = vmatprep.mubr.f32.mxu0 0.0
  %566 = vmatmul.mubr.f32.gmra.mrb[0].mxu0 %v397
  %v567 = vpop.f32.mrb[0].mxu0
  %v568 = vadd.f32 0.0, %v567
  %v569 = vpop.f32.mrb[0].mxu0
  %v570 = vadd.f32 0.0, %v569
  %571 = vmatprep.mubr.f32.mxu0 0.0
  %572 = vmatmul.mubr.f32.gmra.mrb[0].mxu0 %v400
  %v573 = vpop.f32.mrb[0].mxu0
  %v574 = vadd.f32 0.0, %v573
  %v575 = vpop.f32.mrb[0].mxu0
  %v576 = vadd.f32 0.0, %v575
  %577 = vmatprep.mubr.f32.mxu0 0.0
  %578 = vmatmul.mubr.f32.gmra.mrb[0].mxu0 %v403
  %v579 = vpop.f32.mrb[0].mxu0
  %v580 = vadd.f32 0.0, %v579
  %v581 = vpop.f32.mrb[0].mxu0
  %v582 = vadd.f32 0.0, %v581
  %583 = vmatprep.mubr.f32.mxu0 0.0
  %584 = vmatmul.mubr.f32.gmra.mrb[0].mxu0 %v406
  %v585 = vpop.f32.mrb[0].mxu0
  %v586 = vadd.f32 0.0, %v585
  %v587 = vpop.f32.mrb[0].mxu0
  %v588 = vadd.f32 0.0, %v587
  %589 = vdwg.mxu0
  %v590 = vmax.f32 %v479, %v568
  %v591 = vmax.f32 %v481, %v570
  %v592 = vmax.f32 %v485, %v574
  %v593 = vmax.f32 %v487, %v576
  %v594 = vmax.f32 %v491, %v580
  %v595 = vmax.f32 %v493, %v582
  %v596 = vmax.f32 %v497, %v586
  %v597 = vmax.f32 %v499, %v588
  %v598 = vmax.f32 %v590, 0.0
  %v599 = vmax.f32 %v591, 0.0
  %v600 = vmax.f32 %v592, 0.0
  %v601 = vmax.f32 %v593, 0.0
  %v602 = vmax.f32 %v594, 0.0
  %v603 = vmax.f32 %v595, 0.0
  %v604 = vmax.f32 %v596, 0.0
  %v605 = vmax.f32 %v597, 0.0
  %v607 = vlaneseq
  %v608 = vshrl.u32 %v607, 7
  %v609 = vsub.s32 0, %v608
  %v610 = vrot.slane %v170, %v609
  %v611 = vlaneseq
  %v612 = vshrl.u32 %v611, 7
  %v613 = vsub.s32 1, %v612
  %v614 = vrot.slane %v170, %v613
  %v617 = vmul.f32 %v598, %v610
  %v618 = vmul.f32 %v599, %v614
  %v619 = vmul.f32 %v600, %v610
  %v620 = vmul.f32 %v601, %v614
  %v621 = vmul.f32 %v602, %v610
  %v622 = vmul.f32 %v603, %v614
  %v623 = vmul.f32 %v604, %v610
  %v624 = vmul.f32 %v605, %v614
  %v625 = vmul.f32 %v617, %v16
  %v626 = vmul.f32 %v618, %v17
  %v627 = vmul.f32 %v619, %v18
  %v628 = vmul.f32 %v620, %v19
  %v629 = vmul.f32 %v621, %v20
  %v630 = vmul.f32 %v622, %v21
  %v631 = vmul.f32 %v623, %v22
  %v632 = vmul.f32 %v624, %v23
  %v633 = vadd.f32 %v625, %v627
  %v634 = vadd.f32 %v633, %v629
  %v635 = vadd.f32 %v634, %v631
  %v636 = vrot.slane %v635, 4
  %v637 = vadd.f32 %v635, %v636
  %v638 = vrot.slane %v637, 2
  %v639 = vadd.f32 %v637, %v638
  %v640 = vrot.slane %v639, 1
  %v641 = vadd.f32 %v639, %v640
  %v642 = vadd.f32 %v626, %v628
  %v643 = vadd.f32 %v642, %v630
  %v644 = vadd.f32 %v643, %v632
  %v645 = vrot.slane %v644, 4
  %v646 = vadd.f32 %v644, %v645
  %v647 = vrot.slane %v646, 2
  %v648 = vadd.f32 %v646, %v647
  %v649 = vrot.slane %v648, 1
  %v650 = vadd.f32 %v648, %v649
  %651 = vadd.xlane.f32.xlu0 %v641
  %v652 = vpop.xlane.xlu0 %651
  %653 = vadd.xlane.f32.xlu0 %v650
  %v654 = vpop.xlane.xlu0 %653
  %v655 = vsel %vm408, %v652, %v654
  %v656 = vadd.f32 %v655, %v15
  %vm657 = vcmask 1024
  %658 = vst.msk [vmem:[%s2] sm:$0x3] %vm657, %v656
  // Predicated region
  $region10: #{cnn_forward.1} parent=0 // pred_check
    _
  $region11: #{cnn_forward.1} parent=0 // pred_check_branch
    %660 = sbr.rel (0) target = $region13
  $region12: #{cnn_forward.1} parent=0 // pred_region
    _
  $region13: #{cnn_forward.1} parent=0 // pred_fallthru
    _
  // Predicated region
  $region14: #{cnn_forward.1} parent=0 // pred_check
    _
  $region15: #{cnn_forward.1} parent=0 // pred_check_branch
    %662 = sbr.rel (0) target = $region17
  $region16: #{cnn_forward.1} parent=0 // pred_region
    _
  $region17: #{cnn_forward.1} parent=0 // pred_fallthru
    _

</llo_original>
